<compile_context>
chip_gen: v7x
topology: tpu7x:2x2x1
jax: 0.10.0
libtpu: 0.0.40
codegen_flags: <defaults>
</compile_context>

<pallas_src>
import jax
import jax.numpy as jnp
from jax.experimental import pallas as pl
from jax.experimental.pallas import tpu as pltpu


def _compare_mlp_kernel(x_ref, c_ref, w1t_ref, w1b_ref, b1_ref, w2_ref, b2_ref,
                        o_ref):
    # x_ref: (tile, E) rows of [A;B]; c_ref: (tile, E) rows of [beta;alpha].
    # cat([x, c], -1) @ W1 == x @ W1[:E] + c @ W1[E:], so no lane concat.
    h = (jnp.dot(x_ref[...], w1t_ref[...], preferred_element_type=jnp.float32)
         + jnp.dot(c_ref[...], w1b_ref[...], preferred_element_type=jnp.float32)
         + b1_ref[...])
    h = jnp.maximum(h, 0.0)
    y = jnp.dot(h.astype(w2_ref.dtype), w2_ref[...],
                preferred_element_type=jnp.float32) + b2_ref[...]
    o_ref[...] = jnp.maximum(y, 0.0)


def _round_up(a, b):
    return pl.cdiv(a, b) * b


def compare_forward(A, B, beta, alpha, params, *, tm=512,
                    compute_dtype=jnp.float32):
    """Pallas version of Compare.forward -> (V_A, V_B).

    A, B, beta, alpha: (batch, seq, E) float32.
    params: (w1 (2E, H), b1 (H,), w2 (H, H), b2 (H,)).
    """
    w1, b1, w2, b2 = params
    Bn, S, E = A.shape
    H = w2.shape[1]
    M = Bn * S
    M2 = 2 * M  # A/beta rows stacked on top of B/alpha rows (single call)

    # Stack the two passes along the row axis -> one pallas_call.
    x2 = jnp.concatenate([A.reshape(M, E), B.reshape(M, E)], axis=0)
    c2 = jnp.concatenate([beta.reshape(M, E), alpha.reshape(M, E)], axis=0)
    x2 = x2.astype(compute_dtype)
    c2 = c2.astype(compute_dtype)

    # Split W1 so the kernel never concatenates along the lane axis.
    w1_top = w1[:E].astype(compute_dtype)   # (E, H)
    w1_bot = w1[E:].astype(compute_dtype)   # (E, H)
    w2c = w2.astype(compute_dtype)          # (H, H)
    b1r = b1.reshape(1, H).astype(jnp.float32)
    b2r = b2.reshape(1, H).astype(jnp.float32)

    # Row tile: as large as requested but never larger than the (8-aligned)
    # problem; pad rows up instead of asserting divisibility.  Padded rows
    # compute relu(relu(b1) @ W2 + b2) and are sliced off afterwards.
    tile = int(min(tm, _round_up(M2, 8)))
    Mpad = int(_round_up(M2, tile))
    if Mpad != M2:
        pad = Mpad - M2
        x2 = jnp.pad(x2, ((0, pad), (0, 0)))
        c2 = jnp.pad(c2, ((0, pad), (0, 0)))

    out = pl.pallas_call(
        _compare_mlp_kernel,
        out_shape=jax.ShapeDtypeStruct((Mpad, H), jnp.float32),
        grid_spec=pltpu.PrefetchScalarGridSpec(
            num_scalar_prefetch=0,
            grid=(Mpad // tile,),
            in_specs=[
                pl.BlockSpec((tile, E), lambda i: (i, 0)),  # [A;B] rows
                pl.BlockSpec((tile, E), lambda i: (i, 0)),  # [beta;alpha] rows
                pl.BlockSpec((E, H), lambda i: (0, 0)),     # W1 top half
                pl.BlockSpec((E, H), lambda i: (0, 0)),     # W1 bottom half
                pl.BlockSpec((1, H), lambda i: (0, 0)),     # b1
                pl.BlockSpec((H, H), lambda i: (0, 0)),     # W2
                pl.BlockSpec((1, H), lambda i: (0, 0)),     # b2
            ],
            out_specs=pl.BlockSpec((tile, H), lambda i: (i, 0)),
        ),
        compiler_params=pltpu.CompilerParams(
            dimension_semantics=("parallel",)),
    )(x2, c2, w1_top, w1_bot, b1r, w2c, b2r)

    out = out[:M2]
    V_A = out[:M].reshape(Bn, S, H)
    V_B = out[M:].reshape(Bn, S, H)
    return V_A, V_B


def _reference(A, B, beta, alpha, params):
    w1, b1, w2, b2 = params

    def g(x):
        h = jnp.maximum(x @ w1 + b1, 0.0)
        return jnp.maximum(h @ w2 + b2, 0.0)

    V_A = g(jnp.concatenate([A, beta], axis=2))
    V_B = g(jnp.concatenate([B, alpha], axis=2))
    return V_A, V_B


if __name__ == "__main__":
    # Small shapes consistent with the module: num_inputs_compare = 2 * embed.
    batch, seq, embed, num_hiddens = 2, 8, 64, 128
    num_inputs = 2 * embed  # 128

    key = jax.random.PRNGKey(0)
    kA, kB, kb, ka, kw1, kb1, kw2, kb2 = jax.random.split(key, 8)

    A = jax.random.normal(kA, (batch, seq, embed), jnp.float32)
    B = jax.random.normal(kB, (batch, seq, embed), jnp.float32)
    beta = jax.random.normal(kb, (batch, seq, embed), jnp.float32)
    alpha = jax.random.normal(ka, (batch, seq, embed), jnp.float32)

    # Deterministic parameter init (PyTorch Linear-style uniform bounds).
    lim1 = 1.0 / jnp.sqrt(num_inputs)
    lim2 = 1.0 / jnp.sqrt(num_hiddens)
    w1 = jax.random.uniform(kw1, (num_inputs, num_hiddens), jnp.float32, -lim1, lim1)
    b1 = jax.random.uniform(kb1, (num_hiddens,), jnp.float32, -lim1, lim1)
    w2 = jax.random.uniform(kw2, (num_hiddens, num_hiddens), jnp.float32, -lim2, lim2)
    b2 = jax.random.uniform(kb2, (num_hiddens,), jnp.float32, -lim2, lim2)
    params = (w1, b1, w2, b2)

    V_A, V_B = compare_forward(A, B, beta, alpha, params)
    jax.block_until_ready((V_A, V_B))

    V_A_ref, V_B_ref = _reference(A, B, beta, alpha, params)
    assert jnp.allclose(V_A, V_A_ref, atol=1e-4, rtol=1e-4)
    assert jnp.allclose(V_B, V_B_ref, atol=1e-4, rtol=1e-4)
    print("KERNEL_OK")
</pallas_src>

<mosaic_0001>
module attributes {stable_mosaic.version = 11 : i64} {
  func.func @_compare_mlp_kernel(%arg0: i32, %arg1: memref<32x64xf32, #tpu.memory_space<vmem>>, %arg2: memref<32x64xf32, #tpu.memory_space<vmem>>, %arg3: memref<64x128xf32, #tpu.memory_space<vmem>>, %arg4: memref<64x128xf32, #tpu.memory_space<vmem>>, %arg5: memref<1x128xf32, #tpu.memory_space<vmem>>, %arg6: memref<128x128xf32, #tpu.memory_space<vmem>>, %arg7: memref<1x128xf32, #tpu.memory_space<vmem>>, %arg8: memref<32x128xf32, #tpu.memory_space<vmem>>) attributes {dimension_semantics = [#tpu.dimension_semantics<parallel>], iteration_bounds = array<i64: 1>, scalar_prefetch = 0 : i64, scratch_operands = 0 : i64, tpu.core_type = #tpu.core_type<tc>, window_params = [{transform_indices = @transform_0, window_bounds = array<i64: 32, 64>}, {transform_indices = @transform_1, window_bounds = array<i64: 32, 64>}, {pipeline_mode = #tpu.pipeline_mode<synchronous>, transform_indices = @transform_2, window_bounds = array<i64: 64, 128>}, {pipeline_mode = #tpu.pipeline_mode<synchronous>, transform_indices = @transform_3, window_bounds = array<i64: 64, 128>}, {pipeline_mode = #tpu.pipeline_mode<synchronous>, transform_indices = @transform_4, window_bounds = array<i64: 1, 128>}, {pipeline_mode = #tpu.pipeline_mode<synchronous>, transform_indices = @transform_5, window_bounds = array<i64: 128, 128>}, {pipeline_mode = #tpu.pipeline_mode<synchronous>, transform_indices = @transform_6, window_bounds = array<i64: 1, 128>}, {transform_indices = @transform_7, window_bounds = array<i64: 32, 128>}]} {
    %c0 = arith.constant 0 : index
    %c0_0 = arith.constant 0 : index
    %0 = vector.load %arg1[%c0, %c0_0] : memref<32x64xf32, #tpu.memory_space<vmem>>, vector<32x64xf32>
    %c0_1 = arith.constant 0 : index
    %c0_2 = arith.constant 0 : index
    %1 = vector.load %arg3[%c0_1, %c0_2] : memref<64x128xf32, #tpu.memory_space<vmem>>, vector<64x128xf32>
    %cst = arith.constant dense<0.000000e+00> : vector<32x128xf32>
    %2 = tpu.matmul %0, %1, %cst {dimension_numbers = #tpu.dot_dimension_numbers<[1], [0], [0], [1], [0, 0, 1, 1], [], []>} : vector<32x64xf32>, vector<64x128xf32>, vector<32x128xf32> -> vector<32x128xf32>
    %c0_3 = arith.constant 0 : index
    %c0_4 = arith.constant 0 : index
    %3 = vector.load %arg2[%c0_3, %c0_4] : memref<32x64xf32, #tpu.memory_space<vmem>>, vector<32x64xf32>
    %c0_5 = arith.constant 0 : index
    %c0_6 = arith.constant 0 : index
    %4 = vector.load %arg4[%c0_5, %c0_6] : memref<64x128xf32, #tpu.memory_space<vmem>>, vector<64x128xf32>
    %cst_7 = arith.constant dense<0.000000e+00> : vector<32x128xf32>
    %5 = tpu.matmul %3, %4, %cst_7 {dimension_numbers = #tpu.dot_dimension_numbers<[1], [0], [0], [1], [0, 0, 1, 1], [], []>} : vector<32x64xf32>, vector<64x128xf32>, vector<32x128xf32> -> vector<32x128xf32>
    %6 = arith.addf %2, %5 : vector<32x128xf32>
    %c0_8 = arith.constant 0 : index
    %c0_9 = arith.constant 0 : index
    %7 = vector.load %arg5[%c0_8, %c0_9] : memref<1x128xf32, #tpu.memory_space<vmem>>, vector<1x128xf32>
    %8 = vector.broadcast %7 : vector<1x128xf32> to vector<32x128xf32>
    %9 = arith.addf %6, %8 : vector<32x128xf32>
    %cst_10 = arith.constant 0.000000e+00 : f32
    %10 = vector.broadcast %cst_10 : f32 to vector<32x128xf32>
    %11 = arith.maximumf %9, %10 : vector<32x128xf32>
    %c0_11 = arith.constant 0 : index
    %c0_12 = arith.constant 0 : index
    %12 = vector.load %arg6[%c0_11, %c0_12] : memref<128x128xf32, #tpu.memory_space<vmem>>, vector<128x128xf32>
    %cst_13 = arith.constant dense<0.000000e+00> : vector<32x128xf32>
    %13 = tpu.matmul %11, %12, %cst_13 {dimension_numbers = #tpu.dot_dimension_numbers<[1], [0], [0], [1], [0, 0, 1, 1], [], []>} : vector<32x128xf32>, vector<128x128xf32>, vector<32x128xf32> -> vector<32x128xf32>
    %c0_14 = arith.constant 0 : index
    %c0_15 = arith.constant 0 : index
    %14 = vector.load %arg7[%c0_14, %c0_15] : memref<1x128xf32, #tpu.memory_space<vmem>>, vector<1x128xf32>
    %15 = vector.broadcast %14 : vector<1x128xf32> to vector<32x128xf32>
    %16 = arith.addf %13, %15 : vector<32x128xf32>
    %cst_16 = arith.constant 0.000000e+00 : f32
    %17 = vector.broadcast %cst_16 : f32 to vector<32x128xf32>
    %18 = arith.maximumf %16, %17 : vector<32x128xf32>
    %c0_17 = arith.constant 0 : index
    %c0_18 = arith.constant 0 : index
    %19 = vector.load %arg8[%c0_17, %c0_18] : memref<32x128xf32, #tpu.memory_space<vmem>>, vector<32x128xf32>
    tpu.vector_store %arg8[%c0_17, %c0_18], %18 {strides = array<i32>} : memref<32x128xf32, #tpu.memory_space<vmem>>, vector<32x128xf32>,
    return
  }
  func.func @transform_0(%arg0: i32) -> (i32, i32) {
    %c0_i32 = arith.constant 0 : i32
    %c0_i32_0 = arith.constant 0 : i32
    return %arg0, %c0_i32 : i32, i32
  }
  func.func @transform_1(%arg0: i32) -> (i32, i32) {
    %c0_i32 = arith.constant 0 : i32
    %c0_i32_0 = arith.constant 0 : i32
    return %arg0, %c0_i32 : i32, i32
  }
  func.func @transform_2(%arg0: i32) -> (i32, i32) {
    %c0_i32 = arith.constant 0 : i32
    %c0_i32_0 = arith.constant 0 : i32
    %c0_i32_1 = arith.constant 0 : i32
    return %c0_i32, %c0_i32_0 : i32, i32
  }
  func.func @transform_3(%arg0: i32) -> (i32, i32) {
    %c0_i32 = arith.constant 0 : i32
    %c0_i32_0 = arith.constant 0 : i32
    %c0_i32_1 = arith.constant 0 : i32
    return %c0_i32, %c0_i32_0 : i32, i32
  }
  func.func @transform_4(%arg0: i32) -> (i32, i32) {
    %c0_i32 = arith.constant 0 : i32
    %c0_i32_0 = arith.constant 0 : i32
    %c0_i32_1 = arith.constant 0 : i32
    return %c0_i32, %c0_i32_0 : i32, i32
  }
  func.func @transform_5(%arg0: i32) -> (i32, i32) {
    %c0_i32 = arith.constant 0 : i32
    %c0_i32_0 = arith.constant 0 : i32
    %c0_i32_1 = arith.constant 0 : i32
    return %c0_i32, %c0_i32_0 : i32, i32
  }
  func.func @transform_6(%arg0: i32) -> (i32, i32) {
    %c0_i32 = arith.constant 0 : i32
    %c0_i32_0 = arith.constant 0 : i32
    %c0_i32_1 = arith.constant 0 : i32
    return %c0_i32, %c0_i32_0 : i32, i32
  }
  func.func @transform_7(%arg0: i32) -> (i32, i32) {
    %c0_i32 = arith.constant 0 : i32
    %c0_i32_0 = arith.constant 0 : i32
    return %arg0, %c0_i32 : i32, i32
  }
}

</mosaic_0001>

<llo_original>
// kernel: tpu_custom_call.1
$region0: #{tpu_custom_call.1}
  #allocation0 [shape = 'u32[]', space=smem, size = 0x4, offset = 0x4, fixed_abs, tag = 'smem constant byte address 0x4 - core index']
  #allocation1 [shape = 'u32[144,128]{1,0:T(1,128)}', space=vmem, size = 0x12000, scoped, tag = 'internal scratch']
  %s0 = inlined_call_operand.hbm [shape: f32[32,64], index: 0, kind: input, shape index: {}]
  %s1 = inlined_call_operand.hbm [shape: f32[32,64], index: 1, kind: input, shape index: {}]
  %s2 = inlined_call_operand.hbm [shape: f32[64,128], index: 2, kind: input, shape index: {}]
  %s3 = inlined_call_operand.hbm [shape: f32[64,128], index: 3, kind: input, shape index: {}]
  %s4 = inlined_call_operand.vmem [shape: f32[1,128], index: 4, kind: input, shape index: {}]
  %s5 = inlined_call_operand.hbm [shape: f32[128,128], index: 5, kind: input, shape index: {}]
  %s6 = inlined_call_operand.vmem [shape: f32[1,128], index: 6, kind: input, shape index: {}]
  %s7 = inlined_call_operand.hbm [shape: f32[32,128], index: 7, kind: output, shape index: {}]
  %s8 = sld [smem:[#allocation0]]
  $region58: #{tpu_custom_call.1} parent=0
    _
  %s10 = ssub.s32 1, %s8
  %s11 = scalar_select 0, %s10, %s8
  $region1: #{tpu_custom_call.1} parent=0
    #allocation2 [shape = 'u8[16384]{0}', space=vmem, size = 0x4000, scoped, tag = 'input window, operand 0, single buffered']
    #allocation3 [shape = 's32[1]{0}', space=sflag, size = 0x4, scoped, tag = 'scoped memory for tpu_custom_call.1']
    #allocation4 [shape = 's32[1]{0}', space=sflag, size = 0x4, scoped, tag = 'scoped memory for tpu_custom_call.1']
    #allocation5 [shape = 'u8[16384]{0}', space=vmem, size = 0x4000, scoped, tag = 'input window, operand 1, single buffered']
    #allocation6 [shape = 's32[1]{0}', space=sflag, size = 0x4, scoped, tag = 'scoped memory for tpu_custom_call.1']
    #allocation7 [shape = 'u8[32768]{0}', space=vmem, size = 0x8000, scoped, tag = 'input window, operand 2, single buffered']
    #allocation8 [shape = 'u8[32768]{0}', space=vmem, size = 0x8000, scoped, tag = 'input window, operand 3, single buffered']
    #allocation9 [shape = 's32[1]{0}', space=sflag, size = 0x4, scoped, tag = 'scoped memory for tpu_custom_call.1']
    #allocation10 [shape = 'u8[65536]{0}', space=vmem, size = 0x10000, scoped, tag = 'input window, operand 5, single buffered']
    #allocation11 [shape = 'u8[16384]{0}', space=vmem, size = 0x4000, scoped, tag = 'output window, operand 0, single buffered']
    %12 = vsyncpa [#allocation3], 0
    %13 = vsyncpa [#allocation6], 0
    %14 = vsyncpa [#allocation9], 0
    %15 = vsyncpa [#allocation4], 0
    // Predicated region
    $region2: #{tpu_custom_call.1} parent=1 // pred_check
      _
    $region3: #{tpu_custom_call.1} parent=1 // pred_check_branch
      %17 = sbr.rel (0) target = $region5
    $region4: #{tpu_custom_call.1} parent=1 // pred_region
      %s19 = ssub.s32 512, 512
      %20 = vsyncadd [#allocation3], %s19
      %s21 = sshll.u32 [#allocation2], 4
      %s22 = int_to_ptr.vmem [resolvable:$true] %s21
      %27 = dma.hbm_to_vmem [thread:$0]  %s0, 512, %s22, [#allocation3], 128, 128, 8
    $region5: #{tpu_custom_call.1} parent=1 // pred_fallthru
      _
    // Predicated region
    $region6: #{tpu_custom_call.1} parent=1 // pred_check
      _
    $region7: #{tpu_custom_call.1} parent=1 // pred_check_branch
      %29 = sbr.rel (0) target = $region9
    $region8: #{tpu_custom_call.1} parent=1 // pred_region
      %s31 = ssub.s32 512, 512
      %32 = vsyncadd [#allocation6], %s31
      %s33 = sshll.u32 [#allocation5], 4
      %s34 = int_to_ptr.vmem [resolvable:$true] %s33
      %39 = dma.hbm_to_vmem [thread:$0]  %s1, 512, %s34, [#allocation6], 128, 128, 8
    $region9: #{tpu_custom_call.1} parent=1 // pred_fallthru
      _
    // Predicated region
    $region10: #{tpu_custom_call.1} parent=1 // pred_check
      _
    $region11: #{tpu_custom_call.1} parent=1 // pred_check_branch
      %41 = sbr.rel (0) target = $region13
    $region12: #{tpu_custom_call.1} parent=1 // pred_region
      %s43 = ssub.s32 1024, 1024
      %44 = vsyncadd [#allocation6], %s43
      %s45 = sshll.u32 [#allocation7], 4
      %s46 = int_to_ptr.vmem [resolvable:$true] %s45
      %51 = dma.hbm_to_vmem [thread:$0]  %s2, 1024, %s46, [#allocation6], 128, 128, 8
    $region13: #{tpu_custom_call.1} parent=1 // pred_fallthru
      _
    // Predicated region
    $region14: #{tpu_custom_call.1} parent=1 // pred_check
      _
    $region15: #{tpu_custom_call.1} parent=1 // pred_check_branch
      %53 = sbr.rel (0) target = $region17
    $region16: #{tpu_custom_call.1} parent=1 // pred_region
      %s55 = ssub.s32 1024, 1024
      %56 = vsyncadd [#allocation9], %s55
      %s57 = sshll.u32 [#allocation8], 4
      %s58 = int_to_ptr.vmem [resolvable:$true] %s57
      %63 = dma.hbm_to_vmem [thread:$0]  %s3, 1024, %s58, [#allocation9], 128, 128, 8
    $region17: #{tpu_custom_call.1} parent=1 // pred_fallthru
      _
    // Predicated region
    $region18: #{tpu_custom_call.1} parent=1 // pred_check
      _
    $region19: #{tpu_custom_call.1} parent=1 // pred_check_branch
      %65 = sbr.rel (0) target = $region21
    $region20: #{tpu_custom_call.1} parent=1 // pred_region
      _
    $region21: #{tpu_custom_call.1} parent=1 // pred_fallthru
      _
    // Predicated region
    $region22: #{tpu_custom_call.1} parent=1 // pred_check
      _
    $region23: #{tpu_custom_call.1} parent=1 // pred_check_branch
      %67 = sbr.rel (0) target = $region25
    $region24: #{tpu_custom_call.1} parent=1 // pred_region
      %s69 = ssub.s32 2048, 2048
      %70 = vsyncadd [#allocation9], %s69
      %s71 = sshll.u32 [#allocation10], 4
      %s72 = int_to_ptr.vmem [resolvable:$true] %s71
      %77 = dma.hbm_to_vmem [thread:$0]  %s5, 2048, %s72, [#allocation9], 128, 128, 8
    $region25: #{tpu_custom_call.1} parent=1 // pred_fallthru
      _
    // Predicated region
    $region26: #{tpu_custom_call.1} parent=1 // pred_check
      _
    $region27: #{tpu_custom_call.1} parent=1 // pred_check_branch
      %79 = sbr.rel (0) target = $region29
    $region28: #{tpu_custom_call.1} parent=1 // pred_region
      _
    $region29: #{tpu_custom_call.1} parent=1 // pred_fallthru
      _
    // Predicated region
    $region30: #{tpu_custom_call.1} parent=1 // pred_check
      _
    $region31: #{tpu_custom_call.1} parent=1 // pred_check_branch
      %81 = sbr.rel (0) target = $region33
    $region32: #{tpu_custom_call.1} parent=1 // pred_region
      %82 = dma.done [#allocation3], 512
    $region33: #{tpu_custom_call.1} parent=1 // pred_fallthru
      _
    // Predicated region
    $region34: #{tpu_custom_call.1} parent=1 // pred_check
      _
    $region35: #{tpu_custom_call.1} parent=1 // pred_check_branch
      %84 = sbr.rel (0) target = $region37
    $region36: #{tpu_custom_call.1} parent=1 // pred_region
      %85 = dma.done [#allocation6], 512
    $region37: #{tpu_custom_call.1} parent=1 // pred_fallthru
      _
    // Predicated region
    $region38: #{tpu_custom_call.1} parent=1 // pred_check
      _
    $region39: #{tpu_custom_call.1} parent=1 // pred_check_branch
      %87 = sbr.rel (0) target = $region41
    $region40: #{tpu_custom_call.1} parent=1 // pred_region
      %88 = dma.done [#allocation6], 1024
    $region41: #{tpu_custom_call.1} parent=1 // pred_fallthru
      _
    // Predicated region
    $region42: #{tpu_custom_call.1} parent=1 // pred_check
      _
    $region43: #{tpu_custom_call.1} parent=1 // pred_check_branch
      %90 = sbr.rel (0) target = $region45
    $region44: #{tpu_custom_call.1} parent=1 // pred_region
      %91 = dma.done [#allocation9], 1024
    $region45: #{tpu_custom_call.1} parent=1 // pred_fallthru
      _
    // Predicated region
    $region46: #{tpu_custom_call.1} parent=1 // pred_check
      _
    $region47: #{tpu_custom_call.1} parent=1 // pred_check_branch
      %93 = sbr.rel (0) target = $region49
    $region48: #{tpu_custom_call.1} parent=1 // pred_region
      %94 = dma.done [#allocation9], 2048
    $region49: #{tpu_custom_call.1} parent=1 // pred_fallthru
      _
    %v95 = vld [vmem:[#allocation2] sm:$0xff]
    %v96 = vld [vmem:[#allocation2 + $0x8] sm:$0xff]
    %v97 = vld [vmem:[#allocation2 + $0x10] sm:$0xff]
    %v98 = vld [vmem:[#allocation2 + $0x18] sm:$0xff]
    %v99 = vld [vmem:[#allocation7] sm:$0xff]
    %v100 = vld [vmem:[#allocation7 + $0x8] sm:$0xff]
    %v101 = vld [vmem:[#allocation7 + $0x10] sm:$0xff]
    %v102 = vld [vmem:[#allocation7 + $0x18] sm:$0xff]
    %v103 = vld [vmem:[#allocation7 + $0x20] sm:$0xff]
    %v104 = vld [vmem:[#allocation7 + $0x28] sm:$0xff]
    %v105 = vld [vmem:[#allocation7 + $0x30] sm:$0xff]
    %v106 = vld [vmem:[#allocation7 + $0x38] sm:$0xff]
    %v107 = vld [vmem:[#allocation5] sm:$0xff]
    %v108 = vld [vmem:[#allocation5 + $0x8] sm:$0xff]
    %v109 = vld [vmem:[#allocation5 + $0x10] sm:$0xff]
    %v110 = vld [vmem:[#allocation5 + $0x18] sm:$0xff]
    %v111 = vld [vmem:[#allocation8] sm:$0xff]
    %v112 = vld [vmem:[#allocation8 + $0x8] sm:$0xff]
    %v113 = vld [vmem:[#allocation8 + $0x10] sm:$0xff]
    %v114 = vld [vmem:[#allocation8 + $0x18] sm:$0xff]
    %v115 = vld [vmem:[#allocation8 + $0x20] sm:$0xff]
    %v116 = vld [vmem:[#allocation8 + $0x28] sm:$0xff]
    %v117 = vld [vmem:[#allocation8 + $0x30] sm:$0xff]
    %v118 = vld [vmem:[#allocation8 + $0x38] sm:$0xff]
    %vm119 = vcmask 523264
    %v121 = vsel %vm119, %v107, 0
    %v124 = vsel %vm119, %v108, 0
    %v127 = vsel %vm119, %v109, 0
    %v130 = vsel %vm119, %v110, 0
    %132 = vmatprep.subr.mxu0 0.0
    %133 = vmatpush1.msra.mxu0 %v111
    %134 = vmatprep.subr.mxu0 0.0
    %135 = vmatpush1.msra.mxu0 %v112
    %136 = vmatprep.subr.mxu0 0.0
    %137 = vmatpush1.msra.mxu0 %v113
    %138 = vmatprep.subr.mxu0 0.0
    %139 = vmatpush1.msra.mxu0 %v114
    %140 = vmatprep.subr.mxu0 0.0
    %141 = vmatpush1.msra.mxu0 %v115
    %142 = vmatprep.subr.mxu0 0.0
    %143 = vmatpush1.msra.mxu0 %v116
    %144 = vmatprep.subr.mxu0 0.0
    %145 = vmatpush1.msra.mxu0 %v117
    %146 = vmatprep.subr.mxu0 0.0
    %147 = vmatpush1.msra.mxu0 %v118
    %148 = vmatprep.subr.mxu0 0.0
    %149 = vmatpush1.msra.mxu0 0.0
    %150 = vmatprep.subr.mxu0 0.0
    %151 = vmatpush1.msra.mxu0 0.0
    %152 = vmatprep.subr.mxu0 0.0
    %153 = vmatpush1.msra.mxu0 0.0
    %154 = vmatprep.subr.mxu0 0.0
    %155 = vmatpush1.msra.mxu0 0.0
    %156 = vmatprep.subr.mxu0 0.0
    %157 = vmatpush1.msra.mxu0 0.0
    %158 = vmatprep.subr.mxu0 0.0
    %159 = vmatpush1.msra.mxu0 0.0
    %160 = vmatprep.subr.mxu0 0.0
    %161 = vmatpush1.msra.mxu0 0.0
    %162 = vmatprep.subr.mxu0 0.0
    %163 = vmatpush1.msra.mxu0 0.0
    %164 = vmatprep.subr.mxu0 0.0
    %165 = vmatpush1.msra.mxu0 0.0
    %166 = vmatprep.subr.mxu0 0.0
    %167 = vmatpush1.msra.mxu0 0.0
    %168 = vmatprep.subr.mxu0 0.0
    %169 = vmatpush1.msra.mxu0 0.0
    %170 = vmatprep.subr.mxu0 0.0
    %171 = vmatpush1.msra.mxu0 0.0
    %172 = vmatprep.subr.mxu0 0.0
    %173 = vmatpush1.msra.mxu0 0.0
    %174 = vmatprep.subr.mxu0 0.0
    %175 = vmatpush1.msra.mxu0 0.0
    %176 = vmatprep.subr.mxu0 0.0
    %177 = vmatpush1.msra.mxu0 0.0
    %178 = vmatprep.subr.mxu0 0.0
    %179 = vmatpush1.msra.mxu0 0.0
    %180 = vmatprep.subr.mxu0 0.0
    %181 = vmatpush1.msra.mxu0 0.0
    %182 = vmatprep.subr.mxu0 0.0
    %183 = vmatpush1.msra.mxu0 0.0
    %184 = vmatprep.subr.mxu0 0.0
    %185 = vmatpush1.msra.mxu0 0.0
    %186 = vmatprep.subr.mxu0 0.0
    %187 = vmatpush1.msra.mxu0 0.0
    %188 = vmatprep.subr.mxu0 0.0
    %189 = vmatpush1.msra.mxu0 0.0
    %190 = vmatprep.subr.mxu0 0.0
    %191 = vmatpush1.msra.mxu0 0.0
    %192 = vmatprep.subr.mxu0 0.0
    %193 = vmatpush1.msra.mxu0 0.0
    %194 = vmatprep.subr.mxu0 0.0
    %195 = vmatpush1.msra.mxu0 0.0
    %196 = vmatprep.mubr.f32.mxu0 0.0
    %197 = vmatmul.mubr.f32.gmra.mrb[0].mxu0 %v121
    %v198 = vpop.f32.mrb[0].mxu0
    %v199 = vadd.f32 0.0, %v198
    %v200 = vpop.f32.mrb[0].mxu0
    %201 = vmatprep.mubr.f32.mxu0 0.0
    %202 = vmatmul.mubr.f32.gmra.mrb[0].mxu0 %v124
    %v203 = vpop.f32.mrb[0].mxu0
    %v204 = vadd.f32 0.0, %v203
    %v205 = vpop.f32.mrb[0].mxu0
    %206 = vmatprep.mubr.f32.mxu0 0.0
    %207 = vmatmul.mubr.f32.gmra.mrb[0].mxu0 %v127
    %v208 = vpop.f32.mrb[0].mxu0
    %v209 = vadd.f32 0.0, %v208
    %v210 = vpop.f32.mrb[0].mxu0
    %211 = vmatprep.mubr.f32.mxu0 0.0
    %212 = vmatmul.mubr.f32.gmra.mrb[0].mxu0 %v130
    %v213 = vpop.f32.mrb[0].mxu0
    %v214 = vadd.f32 0.0, %v213
    %v215 = vpop.f32.mrb[0].mxu0
    %216 = vdwg.mxu0
    %v218 = vsel %vm119, %v95, 0
    %v221 = vsel %vm119, %v96, 0
    %v224 = vsel %vm119, %v97, 0
    %v227 = vsel %vm119, %v98, 0
    %229 = vmatprep.subr.mxu0 0.0
    %230 = vmatpush1.msra.mxu0 %v99
    %231 = vmatprep.subr.mxu0 0.0
    %232 = vmatpush1.msra.mxu0 %v100
    %233 = vmatprep.subr.mxu0 0.0
    %234 = vmatpush1.msra.mxu0 %v101
    %235 = vmatprep.subr.mxu0 0.0
    %236 = vmatpush1.msra.mxu0 %v102
    %237 = vmatprep.subr.mxu0 0.0
    %238 = vmatpush1.msra.mxu0 %v103
    %239 = vmatprep.subr.mxu0 0.0
    %240 = vmatpush1.msra.mxu0 %v104
    %241 = vmatprep.subr.mxu0 0.0
    %242 = vmatpush1.msra.mxu0 %v105
    %243 = vmatprep.subr.mxu0 0.0
    %244 = vmatpush1.msra.mxu0 %v106
    %245 = vmatprep.subr.mxu0 0.0
    %246 = vmatpush1.msra.mxu0 0.0
    %247 = vmatprep.subr.mxu0 0.0
    %248 = vmatpush1.msra.mxu0 0.0
    %249 = vmatprep.subr.mxu0 0.0
    %250 = vmatpush1.msra.mxu0 0.0
    %251 = vmatprep.subr.mxu0 0.0
    %252 = vmatpush1.msra.mxu0 0.0
    %253 = vmatprep.subr.mxu0 0.0
    %254 = vmatpush1.msra.mxu0 0.0
    %255 = vmatprep.subr.mxu0 0.0
    %256 = vmatpush1.msra.mxu0 0.0
    %257 = vmatprep.subr.mxu0 0.0
    %258 = vmatpush1.msra.mxu0 0.0
    %259 = vmatprep.subr.mxu0 0.0
    %260 = vmatpush1.msra.mxu0 0.0
    %261 = vmatprep.subr.mxu0 0.0
    %262 = vmatpush1.msra.mxu0 0.0
    %263 = vmatprep.subr.mxu0 0.0
    %264 = vmatpush1.msra.mxu0 0.0
    %265 = vmatprep.subr.mxu0 0.0
    %266 = vmatpush1.msra.mxu0 0.0
    %267 = vmatprep.subr.mxu0 0.0
    %268 = vmatpush1.msra.mxu0 0.0
    %269 = vmatprep.subr.mxu0 0.0
    %270 = vmatpush1.msra.mxu0 0.0
    %271 = vmatprep.subr.mxu0 0.0
    %272 = vmatpush1.msra.mxu0 0.0
    %273 = vmatprep.subr.mxu0 0.0
    %274 = vmatpush1.msra.mxu0 0.0
    %275 = vmatprep.subr.mxu0 0.0
    %276 = vmatpush1.msra.mxu0 0.0
    %277 = vmatprep.subr.mxu0 0.0
    %278 = vmatpush1.msra.mxu0 0.0
    %279 = vmatprep.subr.mxu0 0.0
    %280 = vmatpush1.msra.mxu0 0.0
    %281 = vmatprep.subr.mxu0 0.0
    %282 = vmatpush1.msra.mxu0 0.0
    %283 = vmatprep.subr.mxu0 0.0
    %284 = vmatpush1.msra.mxu0 0.0
    %285 = vmatprep.subr.mxu0 0.0
    %286 = vmatpush1.msra.mxu0 0.0
    %287 = vmatprep.subr.mxu0 0.0
    %288 = vmatpush1.msra.mxu0 0.0
    %289 = vmatprep.subr.mxu0 0.0
    %290 = vmatpush1.msra.mxu0 0.0
    %291 = vmatprep.subr.mxu0 0.0
    %292 = vmatpush1.msra.mxu0 0.0
    %293 = vmatprep.mubr.f32.mxu0 0.0
    %294 = vmatmul.mubr.f32.gmra.mrb[0].mxu0 %v218
    %v295 = vpop.f32.mrb[0].mxu0
    %v296 = vadd.f32 %v199, %v295
    %v297 = vpop.f32.mrb[0].mxu0
    %298 = vmatprep.mubr.f32.mxu0 0.0
    %299 = vmatmul.mubr.f32.gmra.mrb[0].mxu0 %v221
    %v300 = vpop.f32.mrb[0].mxu0
    %v301 = vadd.f32 %v204, %v300
    %v302 = vpop.f32.mrb[0].mxu0
    %303 = vmatprep.mubr.f32.mxu0 0.0
    %304 = vmatmul.mubr.f32.gmra.mrb[0].mxu0 %v224
    %v305 = vpop.f32.mrb[0].mxu0
    %v306 = vadd.f32 %v209, %v305
    %v307 = vpop.f32.mrb[0].mxu0
    %308 = vmatprep.mubr.f32.mxu0 0.0
    %309 = vmatmul.mubr.f32.gmra.mrb[0].mxu0 %v227
    %v310 = vpop.f32.mrb[0].mxu0
    %v311 = vadd.f32 %v214, %v310
    %v312 = vpop.f32.mrb[0].mxu0
    %313 = vdwg.mxu0
    %v314 = vld [vmem:[%s4] sm:$0x1]
    %v316 = vlaneseq
    %v317 = vshrl.u32 %v316, 7
    %v318 = vsub.s32 0, %v317
    %v319 = vrot.slane %v314, %v318
    %v321 = vadd.f32 %v296, %v319
    %v322 = vadd.f32 %v301, %v319
    %v323 = vadd.f32 %v306, %v319
    %v324 = vadd.f32 %v311, %v319
    %v325 = vmax.f32 %v321, 0.0
    %v326 = vmax.f32 %v322, 0.0
    %v327 = vmax.f32 %v323, 0.0
    %v328 = vmax.f32 %v324, 0.0
    %v329 = vld [vmem:[#allocation10] sm:$0xff]
    %v330 = vld [vmem:[#allocation10 + $0x8] sm:$0xff]
    %v331 = vld [vmem:[#allocation10 + $0x10] sm:$0xff]
    %v332 = vld [vmem:[#allocation10 + $0x18] sm:$0xff]
    %v333 = vld [vmem:[#allocation10 + $0x20] sm:$0xff]
    %v334 = vld [vmem:[#allocation10 + $0x28] sm:$0xff]
    %v335 = vld [vmem:[#allocation10 + $0x30] sm:$0xff]
    %v336 = vld [vmem:[#allocation10 + $0x38] sm:$0xff]
    %v337 = vld [vmem:[#allocation10 + $0x40] sm:$0xff]
    %v338 = vld [vmem:[#allocation10 + $0x48] sm:$0xff]
    %v339 = vld [vmem:[#allocation10 + $0x50] sm:$0xff]
    %v340 = vld [vmem:[#allocation10 + $0x58] sm:$0xff]
    %v341 = vld [vmem:[#allocation10 + $0x60] sm:$0xff]
    %v342 = vld [vmem:[#allocation10 + $0x68] sm:$0xff]
    %v343 = vld [vmem:[#allocation10 + $0x70] sm:$0xff]
    %v344 = vld [vmem:[#allocation10 + $0x78] sm:$0xff]
    %v345 = vld [vmem:[%s6] sm:$0x1]
    %v347 = vlaneseq
    %v348 = vshrl.u32 %v347, 7
    %v349 = vsub.s32 0, %v348
    %v350 = vrot.slane %v345, %v349
    %352 = vmatprep.subr.mxu0 0.0
    %353 = vmatpush1.msra.mxu0 %v329
    %354 = vmatprep.subr.mxu0 0.0
    %355 = vmatpush1.msra.mxu0 %v330
    %356 = vmatprep.subr.mxu0 0.0
    %357 = vmatpush1.msra.mxu0 %v331
    %358 = vmatprep.subr.mxu0 0.0
    %359 = vmatpush1.msra.mxu0 %v332
    %360 = vmatprep.subr.mxu0 0.0
    %361 = vmatpush1.msra.mxu0 %v333
    %362 = vmatprep.subr.mxu0 0.0
    %363 = vmatpush1.msra.mxu0 %v334
    %364 = vmatprep.subr.mxu0 0.0
    %365 = vmatpush1.msra.mxu0 %v335
    %366 = vmatprep.subr.mxu0 0.0
    %367 = vmatpush1.msra.mxu0 %v336
    %368 = vmatprep.subr.mxu0 0.0
    %369 = vmatpush1.msra.mxu0 %v337
    %370 = vmatprep.subr.mxu0 0.0
    %371 = vmatpush1.msra.mxu0 %v338
    %372 = vmatprep.subr.mxu0 0.0
    %373 = vmatpush1.msra.mxu0 %v339
    %374 = vmatprep.subr.mxu0 0.0
    %375 = vmatpush1.msra.mxu0 %v340
    %376 = vmatprep.subr.mxu0 0.0
    %377 = vmatpush1.msra.mxu0 %v341
    %378 = vmatprep.subr.mxu0 0.0
    %379 = vmatpush1.msra.mxu0 %v342
    %380 = vmatprep.subr.mxu0 0.0
    %381 = vmatpush1.msra.mxu0 %v343
    %382 = vmatprep.subr.mxu0 0.0
    %383 = vmatpush1.msra.mxu0 %v344
    %384 = vmatprep.subr.mxu0 0.0
    %385 = vmatpush1.msra.mxu0 0.0
    %386 = vmatprep.subr.mxu0 0.0
    %387 = vmatpush1.msra.mxu0 0.0
    %388 = vmatprep.subr.mxu0 0.0
    %389 = vmatpush1.msra.mxu0 0.0
    %390 = vmatprep.subr.mxu0 0.0
    %391 = vmatpush1.msra.mxu0 0.0
    %392 = vmatprep.subr.mxu0 0.0
    %393 = vmatpush1.msra.mxu0 0.0
    %394 = vmatprep.subr.mxu0 0.0
    %395 = vmatpush1.msra.mxu0 0.0
    %396 = vmatprep.subr.mxu0 0.0
    %397 = vmatpush1.msra.mxu0 0.0
    %398 = vmatprep.subr.mxu0 0.0
    %399 = vmatpush1.msra.mxu0 0.0
    %400 = vmatprep.subr.mxu0 0.0
    %401 = vmatpush1.msra.mxu0 0.0
    %402 = vmatprep.subr.mxu0 0.0
    %403 = vmatpush1.msra.mxu0 0.0
    %404 = vmatprep.subr.mxu0 0.0
    %405 = vmatpush1.msra.mxu0 0.0
    %406 = vmatprep.subr.mxu0 0.0
    %407 = vmatpush1.msra.mxu0 0.0
    %408 = vmatprep.subr.mxu0 0.0
    %409 = vmatpush1.msra.mxu0 0.0
    %410 = vmatprep.subr.mxu0 0.0
    %411 = vmatpush1.msra.mxu0 0.0
    %412 = vmatprep.subr.mxu0 0.0
    %413 = vmatpush1.msra.mxu0 0.0
    %414 = vmatprep.subr.mxu0 0.0
    %415 = vmatpush1.msra.mxu0 0.0
    %416 = vmatprep.mubr.f32.mxu0 0.0
    %417 = vmatmul.mubr.f32.gmra.mrb[0].mxu0 %v325
    %v418 = vpop.f32.mrb[0].mxu0
    %v419 = vadd.f32 %v350, %v418
    %v420 = vpop.f32.mrb[0].mxu0
    %421 = vmatprep.mubr.f32.mxu0 0.0
    %422 = vmatmul.mubr.f32.gmra.mrb[0].mxu0 %v326
    %v423 = vpop.f32.mrb[0].mxu0
    %v424 = vadd.f32 %v350, %v423
    %v425 = vpop.f32.mrb[0].mxu0
    %426 = vmatprep.mubr.f32.mxu0 0.0
    %427 = vmatmul.mubr.f32.gmra.mrb[0].mxu0 %v327
    %v428 = vpop.f32.mrb[0].mxu0
    %v429 = vadd.f32 %v350, %v428
    %v430 = vpop.f32.mrb[0].mxu0
    %431 = vmatprep.mubr.f32.mxu0 0.0
    %432 = vmatmul.mubr.f32.gmra.mrb[0].mxu0 %v328
    %v433 = vpop.f32.mrb[0].mxu0
    %v434 = vadd.f32 %v350, %v433
    %v435 = vpop.f32.mrb[0].mxu0
    %436 = vdwg.mxu0
    %v437 = vmax.f32 %v419, 0.0
    %v438 = vmax.f32 %v424, 0.0
    %v439 = vmax.f32 %v429, 0.0
    %v440 = vmax.f32 %v434, 0.0
    %441 = vst [vmem:[#allocation11] sm:$0xff] %v437
    %442 = vst [vmem:[#allocation11 + $0x8] sm:$0xff] %v438
    %443 = vst [vmem:[#allocation11 + $0x10] sm:$0xff] %v439
    %444 = vst [vmem:[#allocation11 + $0x18] sm:$0xff] %v440
    // Predicated region
    $region50: #{tpu_custom_call.1} parent=1 // pred_check
      _
    $region51: #{tpu_custom_call.1} parent=1 // pred_check_branch
      %446 = sbr.rel (0) target = $region53
    $region52: #{tpu_custom_call.1} parent=1 // pred_region
      %s448 = ssub.s32 512, 512
      %449 = vsyncadd [#allocation4], %s448
      %s450 = sshll.u32 [#allocation11], 4
      %s451 = int_to_ptr.vmem [resolvable:$true] %s450
      %456 = dma.vmem_to_hbm [thread:$0]  %s451, 512, %s7, [#allocation4], 128, 128, 8
    $region53: #{tpu_custom_call.1} parent=1 // pred_fallthru
      _
    // Predicated region
    $region54: #{tpu_custom_call.1} parent=1 // pred_check
      _
    $region55: #{tpu_custom_call.1} parent=1 // pred_check_branch
      %458 = sbr.rel (0) target = $region57
    $region56: #{tpu_custom_call.1} parent=1 // pred_region
      %459 = dma.done [#allocation4], 512
    $region57: #{tpu_custom_call.1} parent=1 // pred_fallthru
      _
    %460 = vsyncpa [#allocation3], 1
    %461 = vsyncpa [#allocation6], 1
    %462 = vsyncpa [#allocation9], 1
    %463 = vsyncpa [#allocation4], 1

</llo_original>
